<compile_context>
chip_gen: v7x
topology: tpu7x:2x2x1
jax: 0.10.0
libtpu: 0.0.40
codegen_flags: <defaults>
</compile_context>

<pallas_src>
import jax
import jax.numpy as jnp
from jax.experimental import pallas as pl
from jax.experimental.pallas import tpu as pltpu

_LANES = 128
# 4096 rows * 128 lanes * 4 B = 2 MiB per f32 block; with in+out double
# buffering ~8 MiB VMEM, safely under the 16 MiB scoped default on v5e.
_TILE_ROWS = 4096


def _sublane_align(dtype) -> int:
    """Minimum sublane multiple for a dtype (f32: 8, bf16: 16, int8/fp8: 32)."""
    itemsize = jnp.dtype(dtype).itemsize
    return max(8, 32 // max(1, itemsize))


def _ste_kernel(x_ref, o_ref):
    # Single elementwise VPU compare + select on the whole VMEM tile.
    o_ref[...] = (x_ref[...] > 0).astype(o_ref.dtype)


def _tile_rows(rows: int, align: int) -> int:
    """Pick a block row count that yields an even number of ~2 MiB blocks.

    v7x shards the "parallel" grid axis across its two TensorCores; an odd
    (or single-block) grid leaves one core idle for part of the kernel.
    """
    nblocks = max(2, pl.cdiv(rows, _TILE_ROWS))
    if nblocks % 2:
        nblocks += 1
    tile_r = pl.cdiv(rows, nblocks)
    tile_r = -(-tile_r // align) * align        # round up to sublane alignment
    tile_r = max(align, tile_r)
    return min(tile_r, rows)                    # block == full dim is also legal


def _run_ste_2d(x2d: jax.Array, out_dtype) -> jax.Array:
    rows, lanes = x2d.shape
    align = max(_sublane_align(x2d.dtype), _sublane_align(out_dtype))
    tile_r = _tile_rows(rows, align)
    grid = (pl.cdiv(rows, tile_r),)             # partial last block masked by Pallas

    in_bytes = rows * lanes * jnp.dtype(x2d.dtype).itemsize
    out_bytes = rows * lanes * jnp.dtype(out_dtype).itemsize

    return pl.pallas_call(
        _ste_kernel,
        out_shape=jax.ShapeDtypeStruct((rows, lanes), out_dtype),
        grid_spec=pltpu.PrefetchScalarGridSpec(
            num_scalar_prefetch=0,
            grid=grid,
            in_specs=[pl.BlockSpec((tile_r, lanes), lambda i: (i, 0))],
            out_specs=pl.BlockSpec((tile_r, lanes), lambda i: (i, 0)),
        ),
        compiler_params=pltpu.CompilerParams(
            dimension_semantics=("parallel",),
        ),
        cost_estimate=pl.CostEstimate(
            flops=rows * lanes,
            transcendentals=0,
            bytes_accessed=in_bytes + out_bytes,
        ),
    )(x2d)


def straight_through_estimator(x: jax.Array, soft: bool = False,
                               out_dtype=jnp.float32) -> jax.Array:
    """Forward of StraightThroughEstimator: (x > 0) cast to `out_dtype`.

    `soft` only affects the backward pass in the PyTorch module; it is accepted
    for API parity but unused in the forward computation.  `out_dtype` defaults
    to float32 for exact `.float()` parity; bf16 is lossless (values are 0/1)
    and halves write bandwidth if downstream consumers allow it.
    """
    del soft
    orig_shape = x.shape
    n = x.size
    if n == 0:
        return jnp.zeros(orig_shape, out_dtype)

    if n % _LANES == 0:
        # Fast path: free metadata reshape to a lane-dense (rows, 128) slab.
        # Row-partial final blocks are masked by Pallas, so no pad/trim passes:
        # ideal 1x HBM read + 1x HBM write.
        rows = n // _LANES
        out2d = _run_ste_2d(x.reshape(rows, _LANES), out_dtype)
        return out2d.reshape(orig_shape)

    # Ragged path: kernel on the 128-aligned prefix, plain jnp on the <128-elem
    # tail.  (The stitch-back concatenate is one extra pass; still cheaper and
    # simpler than the previous full-array pad + trim round-trips.)
    flat = x.reshape(-1)
    n_prefix = (n // _LANES) * _LANES
    pieces = []
    if n_prefix:
        prefix2d = _run_ste_2d(
            flat[:n_prefix].reshape(n_prefix // _LANES, _LANES), out_dtype)
        pieces.append(prefix2d.reshape(-1))
    pieces.append((flat[n_prefix:] > 0).astype(out_dtype))
    out_flat = pieces[0] if len(pieces) == 1 else jnp.concatenate(pieces)
    return out_flat.reshape(orig_shape)


if __name__ == "__main__":
    key = jax.random.PRNGKey(0)

    # Small NCHW input consistent with a typical conv-activation use site.
    # numel = 2*4*16*16 = 2048 -> fast path, 2-block grid (both v7x cores busy).
    x = jax.random.normal(key, (2, 4, 16, 16), dtype=jnp.float32)
    out = straight_through_estimator(x, soft=False)
    jax.block_until_ready(out)
    ref = (x > 0).astype(jnp.float32)
    assert out.shape == x.shape and out.dtype == jnp.float32
    assert bool(jnp.all(out == ref))

    # Fast path with a row count that is NOT a multiple of the tile rows
    # (exercises the masked partial final block): 13 rows x 128 lanes.
    x_rows = jax.random.normal(jax.random.PRNGKey(1), (13, 128), dtype=jnp.float32)
    out_rows = straight_through_estimator(x_rows)
    jax.block_until_ready(out_rows)
    assert bool(jnp.all(out_rows == (x_rows > 0).astype(jnp.float32)))

    # Ragged path: 1000 = 7*128 + 104 -> kernel prefix + jnp tail + stitch.
    x_rag = jax.random.normal(jax.random.PRNGKey(2), (1000,), dtype=jnp.float32)
    out_rag = straight_through_estimator(x_rag)
    jax.block_until_ready(out_rag)
    assert out_rag.shape == x_rag.shape and out_rag.dtype == jnp.float32
    assert bool(jnp.all(out_rag == (x_rag > 0).astype(jnp.float32)))

    print("KERNEL_OK")
</pallas_src>

<mosaic_0001>
module attributes {stable_mosaic.version = 11 : i64} {
  func.func @_ste_kernel(%arg0: i32, %arg1: memref<8x128xf32, #tpu.memory_space<vmem>>, %arg2: memref<8x128xf32, #tpu.memory_space<vmem>>) attributes {dimension_semantics = [#tpu.dimension_semantics<parallel>], iteration_bounds = array<i64: 2>, scalar_prefetch = 0 : i64, scratch_operands = 0 : i64, tpu.core_type = #tpu.core_type<tc>, window_params = [{transform_indices = @transform_0, window_bounds = array<i64: 8, 128>}, {transform_indices = @transform_1, window_bounds = array<i64: 8, 128>}]} {
    %c0 = arith.constant 0 : index
    %c0_0 = arith.constant 0 : index
    %0 = vector.load %arg1[%c0, %c0_0] : memref<8x128xf32, #tpu.memory_space<vmem>>, vector<8x128xf32>
    %cst = arith.constant 0.000000e+00 : f32
    %1 = vector.broadcast %cst : f32 to vector<8x128xf32>
    %2 = arith.cmpf ogt, %0, %1 : vector<8x128xf32>
    %3 = arith.extui %2 : vector<8x128xi1> to vector<8x128xi32>
    %4 = arith.sitofp %3 : vector<8x128xi32> to vector<8x128xf32>
    %c0_1 = arith.constant 0 : index
    %c0_2 = arith.constant 0 : index
    %5 = vector.load %arg2[%c0_1, %c0_2] : memref<8x128xf32, #tpu.memory_space<vmem>>, vector<8x128xf32>
    tpu.vector_store %arg2[%c0_1, %c0_2], %4 {strides = array<i32>} : memref<8x128xf32, #tpu.memory_space<vmem>>, vector<8x128xf32>,
    return
  }
  func.func @transform_0(%arg0: i32) -> (i32, i32) {
    %c0_i32 = arith.constant 0 : i32
    %c0_i32_0 = arith.constant 0 : i32
    return %arg0, %c0_i32 : i32, i32
  }
  func.func @transform_1(%arg0: i32) -> (i32, i32) {
    %c0_i32 = arith.constant 0 : i32
    %c0_i32_0 = arith.constant 0 : i32
    return %arg0, %c0_i32 : i32, i32
  }
}

</mosaic_0001>

<llo_original>
// kernel: tpu_custom_call.1
$region0: #{tpu_custom_call.1}
  #allocation0 [shape = 'u32[]', space=smem, size = 0x4, offset = 0x4, fixed_abs, tag = 'smem constant byte address 0x4 - core index']
  #allocation1 [shape = 'u32[144,128]{1,0:T(1,128)}', space=vmem, size = 0x12000, scoped, tag = 'internal scratch']
  %s0 = inlined_call_operand.hbm [shape: f32[16,128], index: 0, kind: input, shape index: {}]
  %s1 = inlined_call_operand.hbm [shape: f32[16,128], index: 1, kind: output, shape index: {}]
  %s2 = sld [smem:[#allocation0]]
  $region41: #{tpu_custom_call.1} parent=0
    _
  %s4 = ssub.s32 1, %s2
  %s5 = scalar_select 0, %s4, %s2
  $region1: #{tpu_custom_call.1} parent=0
    #allocation2 [shape = 'u8[8192]{0}', space=vmem, size = 0x2000, scoped, tag = 'input window, operand 0']
    #allocation3 [shape = 's32[2]{0}', space=sflag, size = 0x8, scoped, tag = 'scoped memory for tpu_custom_call.1']
    #allocation4 [shape = 's32[2]{0}', space=sflag, size = 0x8, scoped, tag = 'scoped memory for tpu_custom_call.1']
    #allocation5 [shape = 'u8[8192]{0}', space=vmem, size = 0x2000, scoped, tag = 'output window, operand 0']
    %6 = vsyncpa [#allocation3], 0
    %s7 = scalar_lea.sflag [#allocation3], 1
    %8 = vsyncpa %s7, 0
    %9 = vsyncpa [#allocation4], 0
    %s10 = scalar_lea.sflag [#allocation4], 1
    %11 = vsyncpa %s10, 0
    loop: start=0, step=1, limit=4
    $region2: #{tpu_custom_call.1} parent=1 // loop_pre_header
      _
    $region3: #{tpu_custom_call.1} parent=1 // loop_header
      %s13 = sphi 0, %s17
      %p14 = scmp.ge.s32.totalorder %s13, 4
      %s23 = sphi 0, %s25
      %s26 = sphi 0, %s23
      %s27 = sphi 0, %s26
      %s43 = sphi 0, %s27
      %s49 = sphi 0, %s51
      %s52 = sphi 0, %s49
      %s53 = sphi 0, %s52
      %s69 = sphi 0, %s53
    $region4: #{tpu_custom_call.1} parent=1 // loop_header_branch
      %16 = sbr.rel (%p14) target = $region8
    $region5: #{tpu_custom_call.1} parent=1 // loop_body
      %s18 = ssub.s32 %s13, 1
      %s19 = ssub.s32 %s13, 2
      %s20 = sadd.s32 %s13, 1
      %s21 = ssub.s32 %s13, %s20
      %p22 = scmp.eq.s32.totalorder %s21, 0
      %s24 = sadd.s32 %s23, 1
      %s25 = scalar_select %p22, %s23, %s24
      %p28 = pneg %p22
      %p29 = scmp.eq.s32.totalorder %s13, 1
      %p30 = por %p28, %p29
      %p31 = scmp.ne.s32.totalorder %s23, %s26
      %p32 = scmp.eq.s32.totalorder %s13, 0
      %p33 = por %p31, %p32
      %p34 = scmp.ne.s32.totalorder %s23, %s26
      %p35 = scmp.eq.s32.totalorder %s18, 1
      %p36 = por %p34, %p35
      %p37 = scmp.ne.s32.totalorder %s26, %s27
      %p38 = scmp.eq.s32.totalorder %s18, 0
      %p39 = por %p37, %p38
      %p40 = scmp.ne.s32.totalorder %s26, %s27
      %p41 = scmp.eq.s32.totalorder %s19, 1
      %p42 = por %p40, %p41
      %p44 = scmp.ne.s32.totalorder %s27, %s43
      %p45 = scmp.eq.s32.totalorder %s19, 0
      %p46 = por %p44, %p45
      %s47 = ssub.s32 %s13, %s20
      %p48 = scmp.eq.s32.totalorder %s47, 0
      %s50 = sadd.s32 %s49, 1
      %s51 = scalar_select %p48, %s49, %s50
      %p54 = pneg %p48
      %p55 = scmp.eq.s32.totalorder %s13, 1
      %p56 = por %p54, %p55
      %p57 = scmp.ne.s32.totalorder %s49, %s52
      %p58 = scmp.eq.s32.totalorder %s13, 0
      %p59 = por %p57, %p58
      %p60 = scmp.ne.s32.totalorder %s49, %s52
      %p61 = scmp.eq.s32.totalorder %s18, 1
      %p62 = por %p60, %p61
      %p63 = scmp.ne.s32.totalorder %s52, %s53
      %p64 = scmp.eq.s32.totalorder %s18, 0
      %p65 = por %p63, %p64
      %p66 = scmp.ne.s32.totalorder %s52, %s53
      %p67 = scmp.eq.s32.totalorder %s19, 1
      %p68 = por %p66, %p67
      %p70 = scmp.ne.s32.totalorder %s53, %s69
      %p71 = scmp.eq.s32.totalorder %s19, 0
      %p72 = por %p70, %p71
      %p73 = scmp.le.s32.totalorder 1, %s13
      %p74 = scmp.lt.s32.totalorder %s13, 3
      %p75 = pnand %p73, %p74
      %p76 = pneg %p75
      // Predicated region
      $region9: #{tpu_custom_call.1} parent=5 // pred_check
        _
      $region10: #{tpu_custom_call.1} parent=5 // pred_check_branch
        %78 = sbr.rel (%p75) target = $region12
      $region11: #{tpu_custom_call.1} parent=5 // pred_region
        %s79 = ssub.s32 %s13, 1
      $region12: #{tpu_custom_call.1} parent=5 // pred_fallthru
        _
      %p80 = scmp.lt.s32.totalorder %s13, 2
      // Predicated region
      $region13: #{tpu_custom_call.1} parent=5 // pred_check
        %p81 = pneg %p80
      $region14: #{tpu_custom_call.1} parent=5 // pred_check_branch
        %83 = sbr.rel (%p81) target = $region16
      $region15: #{tpu_custom_call.1} parent=5 // pred_region
        // Predicated region
        $region17: #{tpu_custom_call.1} parent=15 // pred_check
          %p84 = pneg %p33
        $region18: #{tpu_custom_call.1} parent=15 // pred_check_branch
          %86 = sbr.rel (%p84) target = $region20
        $region19: #{tpu_custom_call.1} parent=15 // pred_region
          %s87 = sand.u32 %s23, 1
          %s88 = scalar_lea.sflag [#allocation3], %s87
          %s89 = sand.u32 %s23, 1
          %s90 = smul.addr %s89, 8
          %s91 = scalar_lea.vmem [#allocation2], %s90
          %s93 = ssub.s32 128, 128
          %94 = vsyncadd %s88, %s93
          %s95 = smul.addr %s13, 128
          %s96 = scalar_lea.hbm %s0, %s95
          %s98 = sshll.u32 %s91, 4
          %s99 = int_to_ptr.vmem [resolvable:$true] %s98
          %101 = dma.hbm_to_vmem [thread:$0]  %s96, 128, %s99, %s88
        $region20: #{tpu_custom_call.1} parent=15 // pred_fallthru
          _
      $region16: #{tpu_custom_call.1} parent=5 // pred_fallthru
        _
      %p102 = scmp.le.s32.totalorder 1, %s13
      %p103 = scmp.lt.s32.totalorder %s13, 3
      %p104 = pnand %p102, %p103
      %p105 = pneg %p104
      // Predicated region
      $region21: #{tpu_custom_call.1} parent=5 // pred_check
        _
      $region22: #{tpu_custom_call.1} parent=5 // pred_check_branch
        %107 = sbr.rel (%p104) target = $region24
      $region23: #{tpu_custom_call.1} parent=5 // pred_region
        %s108 = ssub.s32 %s13, 1
        %s109 = sand.u32 %s26, 1
        %s110 = scalar_lea.sflag [#allocation3], %s109
        %s111 = sand.u32 %s26, 1
        %s112 = smul.addr %s111, 8
        %s113 = scalar_lea.vmem [#allocation2], %s112
        // Predicated region
        $region25: #{tpu_custom_call.1} parent=23 // pred_check
          %p114 = pneg %p39
        $region26: #{tpu_custom_call.1} parent=23 // pred_check_branch
          %116 = sbr.rel (%p114) target = $region28
        $region27: #{tpu_custom_call.1} parent=23 // pred_region
          %117 = dma.done %s110, 128
        $region28: #{tpu_custom_call.1} parent=23 // pred_fallthru
          _
        %s118 = sand.u32 %s26, 1
        %s119 = scalar_lea.sflag [#allocation3], %s118
        %s120 = sand.u32 %s26, 1
        %s121 = smul.addr %s120, 8
        %s122 = scalar_lea.vmem [#allocation2], %s121
        %p123 = pneg %p39
        %p124 = pneg %p36
        %p125 = pneg %p65
        %p126 = pneg %p62
        %s127 = sand.u32 %s52, 1
        %s128 = scalar_lea.sflag [#allocation4], %s127
        %s129 = sand.u32 %s52, 1
        %s130 = smul.addr %s129, 8
        %s131 = scalar_lea.vmem [#allocation5], %s130
        %v132 = vld [vmem:[%s113] sm:$0xff]
        %vm133 = vcmp.gt.f32.partialorder %v132, 0.0
        %v134 = vsel %vm133, 1, 0
        %v135 = vcvt.s32.f32 %v134
        %136 = vst [vmem:[%s131] sm:$0xff] %v135
        %s137 = sand.u32 %s52, 1
        %s138 = scalar_lea.sflag [#allocation4], %s137
        %s139 = sand.u32 %s52, 1
        %s140 = smul.addr %s139, 8
        %s141 = scalar_lea.vmem [#allocation5], %s140
        // Predicated region
        $region29: #{tpu_custom_call.1} parent=23 // pred_check
          %p142 = pneg %p62
        $region30: #{tpu_custom_call.1} parent=23 // pred_check_branch
          %144 = sbr.rel (%p142) target = $region32
        $region31: #{tpu_custom_call.1} parent=23 // pred_region
          %s146 = ssub.s32 128, 128
          %147 = vsyncadd %s138, %s146
          %s148 = smul.addr %s18, 128
          %s149 = scalar_lea.hbm %s1, %s148
          %s151 = sshll.u32 %s141, 4
          %s152 = int_to_ptr.vmem [resolvable:$true] %s151
          %154 = dma.vmem_to_hbm [thread:$0]  %s152, 128, %s149, %s138
        $region32: #{tpu_custom_call.1} parent=23 // pred_fallthru
          _
      $region24: #{tpu_custom_call.1} parent=5 // pred_fallthru
        _
      %p155 = scmp.le.s32.totalorder 2, %s13
      // Predicated region
      $region33: #{tpu_custom_call.1} parent=5 // pred_check
        %p156 = pneg %p155
      $region34: #{tpu_custom_call.1} parent=5 // pred_check_branch
        %158 = sbr.rel (%p156) target = $region36
      $region35: #{tpu_custom_call.1} parent=5 // pred_region
        %s159 = ssub.s32 %s13, 2
        // Predicated region
        $region37: #{tpu_custom_call.1} parent=35 // pred_check
          %p160 = pneg %p68
        $region38: #{tpu_custom_call.1} parent=35 // pred_check_branch
          %162 = sbr.rel (%p160) target = $region40
        $region39: #{tpu_custom_call.1} parent=35 // pred_region
          %s163 = sand.u32 %s53, 1
          %s164 = scalar_lea.sflag [#allocation4], %s163
          %s165 = sand.u32 %s53, 1
          %s166 = smul.addr %s165, 8
          %s167 = scalar_lea.vmem [#allocation5], %s166
          %168 = dma.done %s164, 128
        $region40: #{tpu_custom_call.1} parent=35 // pred_fallthru
          _
      $region36: #{tpu_custom_call.1} parent=5 // pred_fallthru
        _
    $region6: #{tpu_custom_call.1} parent=1 // loop_footer
      %s17 = sadd.s32 1, %s13
    $region7: #{tpu_custom_call.1} parent=1 // loop_footer_branch
      %12 = sbr.rel target = $region3
    $region8: #{tpu_custom_call.1} parent=1 // loop_exit
      _
    %169 = vsyncpa [#allocation3], 1
    %s170 = scalar_lea.sflag [#allocation3], 1
    %171 = vsyncpa %s170, 1
    %172 = vsyncpa [#allocation4], 1
    %s173 = scalar_lea.sflag [#allocation4], 1
    %174 = vsyncpa %s173, 1

</llo_original>
